<compile_context>
chip_gen: v6e
topology: v6e:2x2x1
jax: 0.10.0
libtpu: 0.0.40
codegen_flags: <defaults>
</compile_context>

<pallas_src>
import functools

import jax
import jax.numpy as jnp
from jax.experimental import pallas as pl
from jax.experimental.pallas import tpu as pltpu

LN_EPS = 1e-5  # nn.LayerNorm default


# ----------------------------------------------------------------------------
# Kernel
# ----------------------------------------------------------------------------
def _mlp_layer_kernel(x_ref, w1_ref, b1_ref, w2_ref, b2_ref, g_ref, beta_ref, o_ref):
    # MXU: bf16 operands, f32 accumulation via preferred_element_type.
    x = x_ref[...].astype(jnp.bfloat16)

    # Linear 1 + ReLU (bias add / ReLU in f32)
    h = jnp.dot(x, w1_ref[...], preferred_element_type=jnp.float32) + b1_ref[...]
    h = jnp.maximum(h, 0.0)

    # Linear 2
    y = jnp.dot(h.astype(jnp.bfloat16), w2_ref[...],
                preferred_element_type=jnp.float32) + b2_ref[...]

    # Two-pass LayerNorm stats over features (robust when |mean| >> std).
    mean = jnp.mean(y, axis=-1, keepdims=True)
    c = y - mean
    var = jnp.mean(c * c, axis=-1, keepdims=True)
    y_norm = c * jax.lax.rsqrt(var + LN_EPS)

    o_ref[...] = (y_norm * g_ref[...] + beta_ref[...]).astype(o_ref.dtype)


# ----------------------------------------------------------------------------
# Chip-aware helpers (evaluated at trace time; plain Python)
# ----------------------------------------------------------------------------
def _vmem_capacity_bytes():
    try:
        return int(pltpu.get_tpu_info().vmem_capacity_bytes)
    except Exception:
        return 64 * 1024 * 1024  # conservative (v7x-sized) fallback


def _num_tensorcores():
    # v7x has 2 TensorCores per chip; v5e / v6e have 1.
    try:
        kind = jax.devices()[0].device_kind.lower()
        if "v7" in kind:
            return 2
    except Exception:
        pass
    try:
        # v7x also has the smaller (64 MiB per-core) VMEM.
        if _vmem_capacity_bytes() <= 64 * 1024 * 1024:
            return 2
    except Exception:
        pass
    return 1


def _pick_bm(batch, block_m, num_tc):
    """Batch tile: collapse to one step on 1-TC chips, keep >=num_tc steps on v7x."""
    if num_tc >= 2 and batch > 8:
        bm = min(block_m, max(8, batch // num_tc))
    else:
        bm = min(block_m, batch)
    if bm != batch:
        bm = max(8, (bm // 8) * 8)  # sublane alignment for partial tiles
    return bm


def _const_spec(shape, index_map):
    """Single-buffered BlockSpec for operands whose index_map is constant."""
    try:
        return pl.BlockSpec(shape, index_map, pipeline_mode=pl.Buffered(1))
    except TypeError:  # older API without pipeline_mode
        return pl.BlockSpec(shape, index_map)


# ----------------------------------------------------------------------------
# Wrapper
# ----------------------------------------------------------------------------
@functools.partial(jax.jit, static_argnames=("block_m",))
def mlp_layer(x, w1, b1, w2, b2, gamma, beta, *, block_m=512):
    """Fused Linear -> ReLU -> Linear -> LayerNorm.

    x:      (B, D) float32 (or bf16)
    w1, w2: (D, D)   input-features x output-features (ideally pre-cast to bf16)
    b1, b2, gamma, beta: (1, D) float32
    """
    B, D = x.shape
    num_tc = _num_tensorcores()
    vmem_cap = _vmem_capacity_bytes()

    bm = _pick_bm(B, block_m, num_tc)
    n_steps = pl.cdiv(B, bm)
    B_pad = n_steps * bm
    if B_pad != B:
        x = jnp.pad(x, ((0, B_pad - B), (0, 0)))

    # Cast weights to bf16 only if the caller did not already do it.
    w1_bf = w1 if w1.dtype == jnp.bfloat16 else w1.astype(jnp.bfloat16)
    w2_bf = w2 if w2.dtype == jnp.bfloat16 else w2.astype(jnp.bfloat16)

    # VMEM budget: single-buffered bf16 weights + double-buffered f32 act tiles
    # + f32 intermediates, clamped to ~90% of this chip's physical VMEM.
    weight_bytes = 2 * D * D * 2                      # w1 + w2, bf16, Buffered(1)
    act_bytes = 2 * 2 * bm * D * 4                    # x + out tiles, double-buffered
    misc_bytes = 6 * bm * D * 4 + 8 * D * 4           # h/y/stats + bias/gamma/beta
    need = weight_bytes + act_bytes + misc_bytes + (2 << 20)
    vmem_limit = int(min(max(need, 32 * 1024 * 1024), int(vmem_cap * 0.9)))
    if weight_bytes + act_bytes > vmem_limit:
        # TODO(synk): switch to the feature/contraction-tiled weight path here.
        raise NotImplementedError(
            f"resident bf16 weights ({weight_bytes >> 20} MiB) exceed the VMEM "
            f"budget ({vmem_limit >> 20} MiB); feature-tiled path not implemented")

    full = lambda i: (0, 0)
    tiled = lambda i: (i, 0)

    cost = pl.CostEstimate(
        flops=4 * B_pad * D * D,                       # two matmuls
        transcendentals=B_pad,                          # one rsqrt per row
        bytes_accessed=(B_pad * D * x.dtype.itemsize    # x in
                        + B_pad * D * x.dtype.itemsize  # out
                        + 2 * D * D * 2                 # bf16 weights
                        + 4 * D * 4),                   # b1, b2, gamma, beta
    )

    out = pl.pallas_call(
        _mlp_layer_kernel,
        out_shape=jax.ShapeDtypeStruct((B_pad, D), x.dtype),
        grid_spec=pltpu.PrefetchScalarGridSpec(
            num_scalar_prefetch=0,
            grid=(n_steps,),
            in_specs=[
                pl.BlockSpec((bm, D), tiled),        # x (batch-tiled, pipelined)
                _const_spec((D, D), full),           # w1 (bf16, resident, 1-buffered)
                _const_spec((1, D), full),           # b1
                _const_spec((D, D), full),           # w2 (bf16, resident, 1-buffered)
                _const_spec((1, D), full),           # b2
                _const_spec((1, D), full),           # gamma
                _const_spec((1, D), full),           # beta
            ],
            out_specs=pl.BlockSpec((bm, D), tiled),
        ),
        compiler_params=pltpu.CompilerParams(
            dimension_semantics=("parallel",),       # shards batch steps across v7x TCs
            vmem_limit_bytes=vmem_limit,
        ),
        cost_estimate=cost,
    )(x, w1_bf, b1, w2_bf, b2, gamma, beta)

    return out[:B] if B_pad != B else out


# ----------------------------------------------------------------------------
# References
# ----------------------------------------------------------------------------
def _reference_f32(x, w1, b1, w2, b2, gamma, beta):
    h = jnp.maximum(x @ w1 + b1, 0.0)
    y = h @ w2 + b2
    mean = jnp.mean(y, axis=-1, keepdims=True)
    var = jnp.mean((y - mean) ** 2, axis=-1, keepdims=True)
    return (y - mean) / jnp.sqrt(var + LN_EPS) * gamma + beta


def _reference_matched(x, w1, b1, w2, b2, gamma, beta):
    # Same precision recipe as the kernel: bf16 MXU operands, f32 accumulation,
    # f32 LayerNorm.
    h = jnp.dot(x.astype(jnp.bfloat16), w1.astype(jnp.bfloat16),
                preferred_element_type=jnp.float32) + b1
    h = jnp.maximum(h, 0.0)
    y = jnp.dot(h.astype(jnp.bfloat16), w2.astype(jnp.bfloat16),
                preferred_element_type=jnp.float32) + b2
    mean = jnp.mean(y, axis=-1, keepdims=True)
    var = jnp.mean((y - mean) ** 2, axis=-1, keepdims=True)
    return (y - mean) / jnp.sqrt(var + LN_EPS) * gamma + beta


if __name__ == "__main__":
    linear_size = 128   # D (lane-aligned, matches MXU width)
    batch = 256         # 1 step on v5e/v6e, two 128-row "parallel" steps on v7x

    key = jax.random.PRNGKey(0)
    kx, k1, k2, k3, k4 = jax.random.split(key, 5)

    # Deterministic parameter init (PyTorch nn.Linear-style uniform bound).
    bound = 1.0 / (linear_size ** 0.5)
    x = jax.random.normal(kx, (batch, linear_size), dtype=jnp.float32)
    w1 = jax.random.uniform(k1, (linear_size, linear_size), jnp.float32, -bound, bound)
    b1 = jax.random.uniform(k2, (1, linear_size), jnp.float32, -bound, bound)
    w2 = jax.random.uniform(k3, (linear_size, linear_size), jnp.float32, -bound, bound)
    b2 = jax.random.uniform(k4, (1, linear_size), jnp.float32, -bound, bound)
    gamma = jnp.ones((1, linear_size), jnp.float32)   # nn.LayerNorm weight init
    beta = jnp.zeros((1, linear_size), jnp.float32)   # nn.LayerNorm bias init

    # Cast weights to bf16 ONCE outside jit (no per-call cast traffic).
    w1_bf = jax.block_until_ready(w1.astype(jnp.bfloat16))
    w2_bf = jax.block_until_ready(w2.astype(jnp.bfloat16))

    out = jax.block_until_ready(mlp_layer(x, w1_bf, b1, w2_bf, b2, gamma, beta))
    assert out.shape == (batch, linear_size)
    assert jnp.all(jnp.isfinite(out)), "non-finite output"

    # Tight check against a reference with the same bf16-MXU / f32-accum recipe.
    ref_matched = _reference_matched(x, w1, b1, w2, b2, gamma, beta)
    assert jnp.allclose(out, ref_matched, atol=1e-2, rtol=1e-2), \
        "mismatch vs matched-precision reference"

    # Loose check against the pure-f32 PyTorch-equivalent reference.
    ref_f32 = _reference_f32(x, w1, b1, w2, b2, gamma, beta)
    assert jnp.allclose(out, ref_f32, atol=1e-1, rtol=1e-1), "mismatch vs f32 reference"

    print("KERNEL_OK")
</pallas_src>

<mosaic_0001>
module attributes {stable_mosaic.version = 11 : i64} {
  func.func @_mlp_layer_kernel(%arg0: i32, %arg1: memref<128x128xf32, #tpu.memory_space<vmem>>, %arg2: memref<128x128xbf16, #tpu.memory_space<vmem>>, %arg3: memref<1x128xf32, #tpu.memory_space<vmem>>, %arg4: memref<128x128xbf16, #tpu.memory_space<vmem>>, %arg5: memref<1x128xf32, #tpu.memory_space<vmem>>, %arg6: memref<1x128xf32, #tpu.memory_space<vmem>>, %arg7: memref<1x128xf32, #tpu.memory_space<vmem>>, %arg8: memref<128x128xf32, #tpu.memory_space<vmem>>) attributes {dimension_semantics = [#tpu.dimension_semantics<parallel>], iteration_bounds = array<i64: 2>, scalar_prefetch = 0 : i64, scratch_operands = 0 : i64, tpu.core_type = #tpu.core_type<tc>, window_params = [{transform_indices = @transform_0, window_bounds = array<i64: 128, 128>}, {pipeline_mode = #tpu.pipeline_mode<synchronous>, transform_indices = @transform_1, window_bounds = array<i64: 128, 128>}, {pipeline_mode = #tpu.pipeline_mode<synchronous>, transform_indices = @transform_2, window_bounds = array<i64: 1, 128>}, {pipeline_mode = #tpu.pipeline_mode<synchronous>, transform_indices = @transform_3, window_bounds = array<i64: 128, 128>}, {pipeline_mode = #tpu.pipeline_mode<synchronous>, transform_indices = @transform_4, window_bounds = array<i64: 1, 128>}, {pipeline_mode = #tpu.pipeline_mode<synchronous>, transform_indices = @transform_5, window_bounds = array<i64: 1, 128>}, {pipeline_mode = #tpu.pipeline_mode<synchronous>, transform_indices = @transform_6, window_bounds = array<i64: 1, 128>}, {transform_indices = @transform_7, window_bounds = array<i64: 128, 128>}]} {
    %c0 = arith.constant 0 : index
    %c0_0 = arith.constant 0 : index
    %0 = vector.load %arg1[%c0, %c0_0] : memref<128x128xf32, #tpu.memory_space<vmem>>, vector<128x128xf32>
    %1 = arith.truncf %0 : vector<128x128xf32> to vector<128x128xbf16>
    %c0_1 = arith.constant 0 : index
    %c0_2 = arith.constant 0 : index
    %2 = vector.load %arg2[%c0_1, %c0_2] : memref<128x128xbf16, #tpu.memory_space<vmem>>, vector<128x128xbf16>
    %cst = arith.constant dense<0.000000e+00> : vector<128x128xf32>
    %3 = tpu.matmul %1, %2, %cst {dimension_numbers = #tpu.dot_dimension_numbers<[1], [0], [0], [1], [0, 0, 1, 1], [], []>} : vector<128x128xbf16>, vector<128x128xbf16>, vector<128x128xf32> -> vector<128x128xf32>
    %c0_3 = arith.constant 0 : index
    %c0_4 = arith.constant 0 : index
    %4 = vector.load %arg3[%c0_3, %c0_4] : memref<1x128xf32, #tpu.memory_space<vmem>>, vector<1x128xf32>
    %5 = vector.broadcast %4 : vector<1x128xf32> to vector<128x128xf32>
    %6 = arith.addf %3, %5 : vector<128x128xf32>
    %cst_5 = arith.constant 0.000000e+00 : f32
    %7 = vector.broadcast %cst_5 : f32 to vector<128x128xf32>
    %8 = arith.maximumf %6, %7 : vector<128x128xf32>
    %9 = arith.truncf %8 : vector<128x128xf32> to vector<128x128xbf16>
    %c0_6 = arith.constant 0 : index
    %c0_7 = arith.constant 0 : index
    %10 = vector.load %arg4[%c0_6, %c0_7] : memref<128x128xbf16, #tpu.memory_space<vmem>>, vector<128x128xbf16>
    %cst_8 = arith.constant dense<0.000000e+00> : vector<128x128xf32>
    %11 = tpu.matmul %9, %10, %cst_8 {dimension_numbers = #tpu.dot_dimension_numbers<[1], [0], [0], [1], [0, 0, 1, 1], [], []>} : vector<128x128xbf16>, vector<128x128xbf16>, vector<128x128xf32> -> vector<128x128xf32>
    %c0_9 = arith.constant 0 : index
    %c0_10 = arith.constant 0 : index
    %12 = vector.load %arg5[%c0_9, %c0_10] : memref<1x128xf32, #tpu.memory_space<vmem>>, vector<1x128xf32>
    %13 = vector.broadcast %12 : vector<1x128xf32> to vector<128x128xf32>
    %14 = arith.addf %11, %13 : vector<128x128xf32>
    %cst_11 = arith.constant dense<0.000000e+00> : vector<128xf32>
    %15 = vector.multi_reduction <add>, %14, %cst_11 [1] : vector<128x128xf32> to vector<128xf32>
    %16 = vector.shape_cast %15 : vector<128xf32> to vector<128x1xf32>
    %cst_12 = arith.constant 1.280000e+02 : f32
    %17 = vector.broadcast %cst_12 : f32 to vector<128x1xf32>
    %18 = arith.divf %16, %17 : vector<128x1xf32>
    %19 = vector.broadcast %18 : vector<128x1xf32> to vector<128x128xf32>
    %20 = arith.subf %14, %19 : vector<128x128xf32>
    %21 = arith.mulf %20, %20 : vector<128x128xf32>
    %cst_13 = arith.constant dense<0.000000e+00> : vector<128xf32>
    %22 = vector.multi_reduction <add>, %21, %cst_13 [1] : vector<128x128xf32> to vector<128xf32>
    %23 = vector.shape_cast %22 : vector<128xf32> to vector<128x1xf32>
    %cst_14 = arith.constant 1.280000e+02 : f32
    %24 = vector.broadcast %cst_14 : f32 to vector<128x1xf32>
    %25 = arith.divf %23, %24 : vector<128x1xf32>
    %cst_15 = arith.constant 9.99999974E-6 : f32
    %26 = vector.broadcast %cst_15 : f32 to vector<128x1xf32>
    %27 = arith.addf %25, %26 : vector<128x1xf32>
    %28 = math.rsqrt %27 : vector<128x1xf32>
    %29 = vector.broadcast %28 : vector<128x1xf32> to vector<128x128xf32>
    %30 = arith.mulf %20, %29 : vector<128x128xf32>
    %c0_16 = arith.constant 0 : index
    %c0_17 = arith.constant 0 : index
    %31 = vector.load %arg6[%c0_16, %c0_17] : memref<1x128xf32, #tpu.memory_space<vmem>>, vector<1x128xf32>
    %32 = vector.broadcast %31 : vector<1x128xf32> to vector<128x128xf32>
    %33 = arith.mulf %30, %32 : vector<128x128xf32>
    %c0_18 = arith.constant 0 : index
    %c0_19 = arith.constant 0 : index
    %34 = vector.load %arg7[%c0_18, %c0_19] : memref<1x128xf32, #tpu.memory_space<vmem>>, vector<1x128xf32>
    %35 = vector.broadcast %34 : vector<1x128xf32> to vector<128x128xf32>
    %36 = arith.addf %33, %35 : vector<128x128xf32>
    %c0_20 = arith.constant 0 : index
    %c0_21 = arith.constant 0 : index
    %37 = vector.load %arg8[%c0_20, %c0_21] : memref<128x128xf32, #tpu.memory_space<vmem>>, vector<128x128xf32>
    tpu.vector_store %arg8[%c0_20, %c0_21], %36 {strides = array<i32>} : memref<128x128xf32, #tpu.memory_space<vmem>>, vector<128x128xf32>,
    return
  }
  func.func @transform_0(%arg0: i32) -> (i32, i32) {
    %c0_i32 = arith.constant 0 : i32
    %c0_i32_0 = arith.constant 0 : i32
    return %arg0, %c0_i32 : i32, i32
  }
  func.func @transform_1(%arg0: i32) -> (i32, i32) {
    %c0_i32 = arith.constant 0 : i32
    %c0_i32_0 = arith.constant 0 : i32
    %c0_i32_1 = arith.constant 0 : i32
    return %c0_i32, %c0_i32_0 : i32, i32
  }
  func.func @transform_2(%arg0: i32) -> (i32, i32) {
    %c0_i32 = arith.constant 0 : i32
    %c0_i32_0 = arith.constant 0 : i32
    %c0_i32_1 = arith.constant 0 : i32
    return %c0_i32, %c0_i32_0 : i32, i32
  }
  func.func @transform_3(%arg0: i32) -> (i32, i32) {
    %c0_i32 = arith.constant 0 : i32
    %c0_i32_0 = arith.constant 0 : i32
    %c0_i32_1 = arith.constant 0 : i32
    return %c0_i32, %c0_i32_0 : i32, i32
  }
  func.func @transform_4(%arg0: i32) -> (i32, i32) {
    %c0_i32 = arith.constant 0 : i32
    %c0_i32_0 = arith.constant 0 : i32
    %c0_i32_1 = arith.constant 0 : i32
    return %c0_i32, %c0_i32_0 : i32, i32
  }
  func.func @transform_5(%arg0: i32) -> (i32, i32) {
    %c0_i32 = arith.constant 0 : i32
    %c0_i32_0 = arith.constant 0 : i32
    %c0_i32_1 = arith.constant 0 : i32
    return %c0_i32, %c0_i32_0 : i32, i32
  }
  func.func @transform_6(%arg0: i32) -> (i32, i32) {
    %c0_i32 = arith.constant 0 : i32
    %c0_i32_0 = arith.constant 0 : i32
    %c0_i32_1 = arith.constant 0 : i32
    return %c0_i32, %c0_i32_0 : i32, i32
  }
  func.func @transform_7(%arg0: i32) -> (i32, i32) {
    %c0_i32 = arith.constant 0 : i32
    %c0_i32_0 = arith.constant 0 : i32
    return %arg0, %c0_i32 : i32, i32
  }
}

</mosaic_0001>

<llo_original>
// kernel: mlp_layer.1
$region0: #{mlp_layer.1}
  #allocation0 [shape = 'u32[]', space=smem, size = 0x4, offset = 0x4, fixed_abs, tag = 'smem constant byte address 0x4 - core index']
  #allocation1 [shape = 'u32[144,128]{1,0:T(1,128)}', space=vmem, size = 0x12000, scoped, tag = 'internal scratch']
  %s0 = inlined_call_operand.hbm [shape: f32[256,128], index: 0, kind: input, shape index: {}]
  %s1 = inlined_call_operand.hbm [shape: bf16[128,128], index: 1, kind: input, shape index: {}]
  %s2 = inlined_call_operand.vmem [shape: f32[1,128], index: 2, kind: input, shape index: {}]
  %s3 = inlined_call_operand.hbm [shape: bf16[128,128], index: 3, kind: input, shape index: {}]
  %s4 = inlined_call_operand.vmem [shape: f32[1,128], index: 4, kind: input, shape index: {}]
  %s5 = inlined_call_operand.vmem [shape: f32[1,128], index: 5, kind: input, shape index: {}]
  %s6 = inlined_call_operand.vmem [shape: f32[1,128], index: 6, kind: input, shape index: {}]
  %s7 = inlined_call_operand.hbm [shape: f32[256,128], index: 7, kind: output, shape index: {}]
  %s8 = sld [smem:[#allocation0]]
  $region73: #{mlp_layer.1} parent=0
    _
  %s10 = ssub.s32 1, %s8
  %s11 = scalar_select 0, %s10, %s8
  $region1: #{mlp_layer.1} parent=0
    #allocation2 [shape = 'u8[131072]{0}', space=vmem, size = 0x20000, scoped, tag = 'input window, operand 0']
    #allocation3 [shape = 's32[2]{0}', space=sflag, size = 0x8, scoped, tag = 'scoped memory for mlp_layer.1']
    #allocation4 [shape = 's32[2]{0}', space=sflag, size = 0x8, scoped, tag = 'scoped memory for mlp_layer.1']
    #allocation5 [shape = 'u8[32768]{0}', space=vmem, size = 0x8000, scoped, tag = 'input window, operand 1, single buffered']
    #allocation6 [shape = 's32[1]{0}', space=sflag, size = 0x4, scoped, tag = 'scoped memory for mlp_layer.1']
    #allocation7 [shape = 'u8[32768]{0}', space=vmem, size = 0x8000, scoped, tag = 'input window, operand 3, single buffered']
    #allocation8 [shape = 'u8[131072]{0}', space=vmem, size = 0x20000, scoped, tag = 'output window, operand 0']
    %12 = vsyncpa [#allocation3], 0
    %s13 = scalar_lea.sflag [#allocation3], 1
    %14 = vsyncpa %s13, 0
    %15 = vsyncpa [#allocation6], 0
    %16 = vsyncpa [#allocation4], 0
    %s17 = scalar_lea.sflag [#allocation4], 1
    %18 = vsyncpa %s17, 0
    loop: start=0, step=1, limit=4
    $region2: #{mlp_layer.1} parent=1 // loop_pre_header
      _
    $region3: #{mlp_layer.1} parent=1 // loop_header
      %s20 = sphi 0, %s24
      %p21 = scmp.ge.s32.totalorder %s20, 4
      %s30 = sphi 0, %s32
      %s33 = sphi 0, %s30
      %s34 = sphi 0, %s33
      %s50 = sphi 0, %s34
      %s54 = sphi 0, %s54
      %s56 = sphi 0, %s54
      %s57 = sphi 0, %s56
      %s71 = sphi 0, %s57
      %s75 = sphi 0, %s75
      %s77 = sphi 0, %s75
      %s78 = sphi 0, %s77
      %s92 = sphi 0, %s78
      %s96 = sphi 0, %s96
      %s98 = sphi 0, %s96
      %s99 = sphi 0, %s98
      %s113 = sphi 0, %s99
      %s117 = sphi 0, %s117
      %s119 = sphi 0, %s117
      %s120 = sphi 0, %s119
      %s134 = sphi 0, %s120
      %s138 = sphi 0, %s138
      %s140 = sphi 0, %s138
      %s141 = sphi 0, %s140
      %s155 = sphi 0, %s141
      %s159 = sphi 0, %s159
      %s161 = sphi 0, %s159
      %s162 = sphi 0, %s161
      %s176 = sphi 0, %s162
      %s182 = sphi 0, %s184
      %s185 = sphi 0, %s182
      %s186 = sphi 0, %s185
      %s202 = sphi 0, %s186
    $region4: #{mlp_layer.1} parent=1 // loop_header_branch
      %23 = sbr.rel (%p21) target = $region8
    $region5: #{mlp_layer.1} parent=1 // loop_body
      %s25 = ssub.s32 %s20, 1
      %s26 = ssub.s32 %s20, 2
      %s27 = sadd.s32 %s20, 1
      %s28 = ssub.s32 %s20, %s27
      %p29 = scmp.eq.s32.totalorder %s28, 0
      %s31 = sadd.s32 %s30, 1
      %s32 = scalar_select %p29, %s30, %s31
      %p35 = pneg %p29
      %p36 = scmp.eq.s32.totalorder %s20, 1
      %p37 = por %p35, %p36
      %p38 = scmp.ne.s32.totalorder %s30, %s33
      %p39 = scmp.eq.s32.totalorder %s20, 0
      %p40 = por %p38, %p39
      %p41 = scmp.ne.s32.totalorder %s30, %s33
      %p42 = scmp.eq.s32.totalorder %s25, 1
      %p43 = por %p41, %p42
      %p44 = scmp.ne.s32.totalorder %s33, %s34
      %p45 = scmp.eq.s32.totalorder %s25, 0
      %p46 = por %p44, %p45
      %p47 = scmp.ne.s32.totalorder %s33, %s34
      %p48 = scmp.eq.s32.totalorder %s26, 1
      %p49 = por %p47, %p48
      %p51 = scmp.ne.s32.totalorder %s34, %s50
      %p52 = scmp.eq.s32.totalorder %s26, 0
      %p53 = por %p51, %p52
      %s55 = sadd.s32 %s54, 1
      %p58 = scmp.eq.s32.totalorder %s20, 1
      %p59 = scmp.ne.s32.totalorder %s54, %s56
      %p60 = scmp.eq.s32.totalorder %s20, 0
      %p61 = por %p59, %p60
      %p62 = scmp.ne.s32.totalorder %s54, %s56
      %p63 = scmp.eq.s32.totalorder %s25, 1
      %p64 = por %p62, %p63
      %p65 = scmp.ne.s32.totalorder %s56, %s57
      %p66 = scmp.eq.s32.totalorder %s25, 0
      %p67 = por %p65, %p66
      %p68 = scmp.ne.s32.totalorder %s56, %s57
      %p69 = scmp.eq.s32.totalorder %s26, 1
      %p70 = por %p68, %p69
      %p72 = scmp.ne.s32.totalorder %s57, %s71
      %p73 = scmp.eq.s32.totalorder %s26, 0
      %p74 = por %p72, %p73
      %s76 = sadd.s32 %s75, 1
      %p79 = scmp.eq.s32.totalorder %s20, 1
      %p80 = scmp.ne.s32.totalorder %s75, %s77
      %p81 = scmp.eq.s32.totalorder %s20, 0
      %p82 = por %p80, %p81
      %p83 = scmp.ne.s32.totalorder %s75, %s77
      %p84 = scmp.eq.s32.totalorder %s25, 1
      %p85 = por %p83, %p84
      %p86 = scmp.ne.s32.totalorder %s77, %s78
      %p87 = scmp.eq.s32.totalorder %s25, 0
      %p88 = por %p86, %p87
      %p89 = scmp.ne.s32.totalorder %s77, %s78
      %p90 = scmp.eq.s32.totalorder %s26, 1
      %p91 = por %p89, %p90
      %p93 = scmp.ne.s32.totalorder %s78, %s92
      %p94 = scmp.eq.s32.totalorder %s26, 0
      %p95 = por %p93, %p94
      %s97 = sadd.s32 %s96, 1
      %p100 = scmp.eq.s32.totalorder %s20, 1
      %p101 = scmp.ne.s32.totalorder %s96, %s98
      %p102 = scmp.eq.s32.totalorder %s20, 0
      %p103 = por %p101, %p102
      %p104 = scmp.ne.s32.totalorder %s96, %s98
      %p105 = scmp.eq.s32.totalorder %s25, 1
      %p106 = por %p104, %p105
      %p107 = scmp.ne.s32.totalorder %s98, %s99
      %p108 = scmp.eq.s32.totalorder %s25, 0
      %p109 = por %p107, %p108
      %p110 = scmp.ne.s32.totalorder %s98, %s99
      %p111 = scmp.eq.s32.totalorder %s26, 1
      %p112 = por %p110, %p111
      %p114 = scmp.ne.s32.totalorder %s99, %s113
      %p115 = scmp.eq.s32.totalorder %s26, 0
      %p116 = por %p114, %p115
      %s118 = sadd.s32 %s117, 1
      %p121 = scmp.eq.s32.totalorder %s20, 1
      %p122 = scmp.ne.s32.totalorder %s117, %s119
      %p123 = scmp.eq.s32.totalorder %s20, 0
      %p124 = por %p122, %p123
      %p125 = scmp.ne.s32.totalorder %s117, %s119
      %p126 = scmp.eq.s32.totalorder %s25, 1
      %p127 = por %p125, %p126
      %p128 = scmp.ne.s32.totalorder %s119, %s120
      %p129 = scmp.eq.s32.totalorder %s25, 0
      %p130 = por %p128, %p129
      %p131 = scmp.ne.s32.totalorder %s119, %s120
      %p132 = scmp.eq.s32.totalorder %s26, 1
      %p133 = por %p131, %p132
      %p135 = scmp.ne.s32.totalorder %s120, %s134
      %p136 = scmp.eq.s32.totalorder %s26, 0
      %p137 = por %p135, %p136
      %s139 = sadd.s32 %s138, 1
      %p142 = scmp.eq.s32.totalorder %s20, 1
      %p143 = scmp.ne.s32.totalorder %s138, %s140
      %p144 = scmp.eq.s32.totalorder %s20, 0
      %p145 = por %p143, %p144
      %p146 = scmp.ne.s32.totalorder %s138, %s140
      %p147 = scmp.eq.s32.totalorder %s25, 1
      %p148 = por %p146, %p147
      %p149 = scmp.ne.s32.totalorder %s140, %s141
      %p150 = scmp.eq.s32.totalorder %s25, 0
      %p151 = por %p149, %p150
      %p152 = scmp.ne.s32.totalorder %s140, %s141
      %p153 = scmp.eq.s32.totalorder %s26, 1
      %p154 = por %p152, %p153
      %p156 = scmp.ne.s32.totalorder %s141, %s155
      %p157 = scmp.eq.s32.totalorder %s26, 0
      %p158 = por %p156, %p157
      %s160 = sadd.s32 %s159, 1
      %p163 = scmp.eq.s32.totalorder %s20, 1
      %p164 = scmp.ne.s32.totalorder %s159, %s161
      %p165 = scmp.eq.s32.totalorder %s20, 0
      %p166 = por %p164, %p165
      %p167 = scmp.ne.s32.totalorder %s159, %s161
      %p168 = scmp.eq.s32.totalorder %s25, 1
      %p169 = por %p167, %p168
      %p170 = scmp.ne.s32.totalorder %s161, %s162
      %p171 = scmp.eq.s32.totalorder %s25, 0
      %p172 = por %p170, %p171
      %p173 = scmp.ne.s32.totalorder %s161, %s162
      %p174 = scmp.eq.s32.totalorder %s26, 1
      %p175 = por %p173, %p174
      %p177 = scmp.ne.s32.totalorder %s162, %s176
      %p178 = scmp.eq.s32.totalorder %s26, 0
      %p179 = por %p177, %p178
      %s180 = ssub.s32 %s20, %s27
      %p181 = scmp.eq.s32.totalorder %s180, 0
      %s183 = sadd.s32 %s182, 1
      %s184 = scalar_select %p181, %s182, %s183
      %p187 = pneg %p181
      %p188 = scmp.eq.s32.totalorder %s20, 1
      %p189 = por %p187, %p188
      %p190 = scmp.ne.s32.totalorder %s182, %s185
      %p191 = scmp.eq.s32.totalorder %s20, 0
      %p192 = por %p190, %p191
      %p193 = scmp.ne.s32.totalorder %s182, %s185
      %p194 = scmp.eq.s32.totalorder %s25, 1
      %p195 = por %p193, %p194
      %p196 = scmp.ne.s32.totalorder %s185, %s186
      %p197 = scmp.eq.s32.totalorder %s25, 0
      %p198 = por %p196, %p197
      %p199 = scmp.ne.s32.totalorder %s185, %s186
      %p200 = scmp.eq.s32.totalorder %s26, 1
      %p201 = por %p199, %p200
      %p203 = scmp.ne.s32.totalorder %s186, %s202
      %p204 = scmp.eq.s32.totalorder %s26, 0
      %p205 = por %p203, %p204
      %p206 = scmp.le.s32.totalorder 1, %s20
      %p207 = scmp.lt.s32.totalorder %s20, 3
      %p208 = pnand %p206, %p207
      %p209 = pneg %p208
      // Predicated region
      $region9: #{mlp_layer.1} parent=5 // pred_check
        _
      $region10: #{mlp_layer.1} parent=5 // pred_check_branch
        %211 = sbr.rel (%p208) target = $region12
      $region11: #{mlp_layer.1} parent=5 // pred_region
        %s212 = ssub.s32 %s20, 1
        // Predicated region
        $region13: #{mlp_layer.1} parent=11 // pred_check
          %p213 = pneg %p67
        $region14: #{mlp_layer.1} parent=11 // pred_check_branch
          %215 = sbr.rel (%p213) target = $region16
        $region15: #{mlp_layer.1} parent=11 // pred_region
          %s217 = ssub.s32 1024, 1024
          %218 = vsyncadd [#allocation6], %s217
          %s219 = sshll.u32 [#allocation5], 4
          %s220 = int_to_ptr.vmem [resolvable:$true] %s219
          %225 = dma.hbm_to_vmem [thread:$0]  %s1, 1024, %s220, [#allocation6], 64, 64, 4
        $region16: #{mlp_layer.1} parent=11 // pred_fallthru
          _
        // Predicated region
        $region17: #{mlp_layer.1} parent=11 // pred_check
          %p226 = pneg %p88
        $region18: #{mlp_layer.1} parent=11 // pred_check_branch
          %228 = sbr.rel (%p226) target = $region20
        $region19: #{mlp_layer.1} parent=11 // pred_region
          _
        $region20: #{mlp_layer.1} parent=11 // pred_fallthru
          _
        // Predicated region
        $region21: #{mlp_layer.1} parent=11 // pred_check
          %p229 = pneg %p109
        $region22: #{mlp_layer.1} parent=11 // pred_check_branch
          %231 = sbr.rel (%p229) target = $region24
        $region23: #{mlp_layer.1} parent=11 // pred_region
          %s233 = ssub.s32 1024, 1024
          %234 = vsyncadd [#allocation6], %s233
          %s235 = sshll.u32 [#allocation7], 4
          %s236 = int_to_ptr.vmem [resolvable:$true] %s235
          %241 = dma.hbm_to_vmem [thread:$0]  %s3, 1024, %s236, [#allocation6], 64, 64, 4
        $region24: #{mlp_layer.1} parent=11 // pred_fallthru
          _
        // Predicated region
        $region25: #{mlp_layer.1} parent=11 // pred_check
          %p242 = pneg %p130
        $region26: #{mlp_layer.1} parent=11 // pred_check_branch
          %244 = sbr.rel (%p242) target = $region28
        $region27: #{mlp_layer.1} parent=11 // pred_region
          _
        $region28: #{mlp_layer.1} parent=11 // pred_fallthru
          _
        // Predicated region
        $region29: #{mlp_layer.1} parent=11 // pred_check
          %p245 = pneg %p151
        $region30: #{mlp_layer.1} parent=11 // pred_check_branch
          %247 = sbr.rel (%p245) target = $region32
        $region31: #{mlp_layer.1} parent=11 // pred_region
          _
        $region32: #{mlp_layer.1} parent=11 // pred_fallthru
          _
        // Predicated region
        $region33: #{mlp_layer.1} parent=11 // pred_check
          %p248 = pneg %p172
        $region34: #{mlp_layer.1} parent=11 // pred_check_branch
          %250 = sbr.rel (%p248) target = $region36
        $region35: #{mlp_layer.1} parent=11 // pred_region
          _
        $region36: #{mlp_layer.1} parent=11 // pred_fallthru
          _
      $region12: #{mlp_layer.1} parent=5 // pred_fallthru
        _
      %p251 = scmp.lt.s32.totalorder %s20, 2
      // Predicated region
      $region37: #{mlp_layer.1} parent=5 // pred_check
        %p252 = pneg %p251
      $region38: #{mlp_layer.1} parent=5 // pred_check_branch
        %254 = sbr.rel (%p252) target = $region40
      $region39: #{mlp_layer.1} parent=5 // pred_region
        // Predicated region
        $region41: #{mlp_layer.1} parent=39 // pred_check
          %p255 = pneg %p40
        $region42: #{mlp_layer.1} parent=39 // pred_check_branch
          %257 = sbr.rel (%p255) target = $region44
        $region43: #{mlp_layer.1} parent=39 // pred_region
          %s258 = sand.u32 %s30, 1
          %s259 = scalar_lea.sflag [#allocation3], %s258
          %s260 = sand.u32 %s30, 1
          %s261 = smul.addr %s260, 128
          %s262 = scalar_lea.vmem [#allocation2], %s261
          %s263 = smul.u32 16, %s20
          %s265 = ssub.s32 2048, 2048
          %266 = vsyncadd %s259, %s265
          %s267 = smul.addr %s263, 128
          %s268 = scalar_lea.hbm %s0, %s267
          %s269 = sshll.u32 %s262, 4
          %s270 = int_to_ptr.vmem [resolvable:$true] %s269
          %275 = dma.hbm_to_vmem [thread:$0]  %s268, 2048, %s270, %s259, 128, 128, 8
        $region44: #{mlp_layer.1} parent=39 // pred_fallthru
          _
      $region40: #{mlp_layer.1} parent=5 // pred_fallthru
        _
      %p276 = scmp.le.s32.totalorder 1, %s20
      %p277 = scmp.lt.s32.totalorder %s20, 3
      %p278 = pnand %p276, %p277
      %p279 = pneg %p278
      // Predicated region
      $region45: #{mlp_layer.1} parent=5 // pred_check
        _
      $region46: #{mlp_layer.1} parent=5 // pred_check_branch
        %281 = sbr.rel (%p278) target = $region48
      $region47: #{mlp_layer.1} parent=5 // pred_region
        %s282 = ssub.s32 %s20, 1
        %s283 = sand.u32 %s33, 1
        %s284 = scalar_lea.sflag [#allocation3], %s283
        %s285 = sand.u32 %s33, 1
        %s286 = smul.addr %s285, 128
        %s287 = scalar_lea.vmem [#allocation2], %s286
        // Predicated region
        $region49: #{mlp_layer.1} parent=47 // pred_check
          %p288 = pneg %p46
        $region50: #{mlp_layer.1} parent=47 // pred_check_branch
          %290 = sbr.rel (%p288) target = $region52
        $region51: #{mlp_layer.1} parent=47 // pred_region
          %291 = dma.done %s284, 2048
        $region52: #{mlp_layer.1} parent=47 // pred_fallthru
          _
        // Predicated region
        $region53: #{mlp_layer.1} parent=47 // pred_check
          %p292 = pneg %p67
        $region54: #{mlp_layer.1} parent=47 // pred_check_branch
          %294 = sbr.rel (%p292) target = $region56
        $region55: #{mlp_layer.1} parent=47 // pred_region
          %295 = dma.done [#allocation6], 1024
        $region56: #{mlp_layer.1} parent=47 // pred_fallthru
          _
        // Predicated region
        $region57: #{mlp_layer.1} parent=47 // pred_check
          %p296 = pneg %p109
        $region58: #{mlp_layer.1} parent=47 // pred_check_branch
          %298 = sbr.rel (%p296) target = $region60
        $region59: #{mlp_layer.1} parent=47 // pred_region
          %299 = dma.done [#allocation6], 1024
        $region60: #{mlp_layer.1} parent=47 // pred_fallthru
          _
        %s300 = sand.u32 %s33, 1
        %s301 = scalar_lea.sflag [#allocation3], %s300
        %s302 = sand.u32 %s33, 1
        %s303 = smul.addr %s302, 128
        %s304 = scalar_lea.vmem [#allocation2], %s303
        %p305 = pneg %p46
        %p306 = pneg %p43
        %p307 = pneg %p67
        %p308 = pneg %p64
        %p309 = pneg %p88
        %p310 = pneg %p85
        %p311 = pneg %p109
        %p312 = pneg %p106
        %p313 = pneg %p130
        %p314 = pneg %p127
        %p315 = pneg %p151
        %p316 = pneg %p148
        %p317 = pneg %p172
        %p318 = pneg %p169
        %p319 = pneg %p198
        %p320 = pneg %p195
        %s321 = sand.u32 %s185, 1
        %s322 = scalar_lea.sflag [#allocation4], %s321
        %s323 = sand.u32 %s185, 1
        %s324 = smul.addr %s323, 128
        %s325 = scalar_lea.vmem [#allocation8], %s324
        %s326 = smul.u32 16, %s25
        %s327 = smul.u32 16, %s25
        %v329 = vld [vmem:[%s287] sm:$0xff]
        %v330 = vld [vmem:[%s287 + $0x8] sm:$0xff]
        %v331 = vld [vmem:[%s287 + $0x10] sm:$0xff]
        %v332 = vld [vmem:[%s287 + $0x18] sm:$0xff]
        %v333 = vld [vmem:[%s287 + $0x20] sm:$0xff]
        %v334 = vld [vmem:[%s287 + $0x28] sm:$0xff]
        %v335 = vld [vmem:[%s287 + $0x30] sm:$0xff]
        %v336 = vld [vmem:[%s287 + $0x38] sm:$0xff]
        %v337 = vld [vmem:[%s287 + $0x40] sm:$0xff]
        %v338 = vld [vmem:[%s287 + $0x48] sm:$0xff]
        %v339 = vld [vmem:[%s287 + $0x50] sm:$0xff]
        %v340 = vld [vmem:[%s287 + $0x58] sm:$0xff]
        %v341 = vld [vmem:[%s287 + $0x60] sm:$0xff]
        %v342 = vld [vmem:[%s287 + $0x68] sm:$0xff]
        %v343 = vld [vmem:[%s287 + $0x70] sm:$0xff]
        %v344 = vld [vmem:[%s287 + $0x78] sm:$0xff]
        %v345 = vpack.c.bf16 %v330, %v329
        %v346 = vpack.c.bf16 %v332, %v331
        %v347 = vpack.c.bf16 %v334, %v333
        %v348 = vpack.c.bf16 %v336, %v335
        %v349 = vpack.c.bf16 %v338, %v337
        %v350 = vpack.c.bf16 %v340, %v339
        %v351 = vpack.c.bf16 %v342, %v341
        %v352 = vpack.c.bf16 %v344, %v343
        %v353 = vld [vmem:[#allocation5] sm:$0xf]
        %v354 = vld [vmem:[#allocation5 + $0x4] sm:$0xf]
        %v355 = vld [vmem:[#allocation5 + $0x8] sm:$0xf]
        %v356 = vld [vmem:[#allocation5 + $0xc] sm:$0xf]
        %v357 = vld [vmem:[#allocation5 + $0x10] sm:$0xf]
        %v358 = vld [vmem:[#allocation5 + $0x14] sm:$0xf]
        %v359 = vld [vmem:[#allocation5 + $0x18] sm:$0xf]
        %v360 = vld [vmem:[#allocation5 + $0x1c] sm:$0xf]
        %v361 = vld [vmem:[#allocation5 + $0x20] sm:$0xf]
        %v362 = vld [vmem:[#allocation5 + $0x24] sm:$0xf]
        %v363 = vld [vmem:[#allocation5 + $0x28] sm:$0xf]
        %v364 = vld [vmem:[#allocation5 + $0x2c] sm:$0xf]
        %v365 = vld [vmem:[#allocation5 + $0x30] sm:$0xf]
        %v366 = vld [vmem:[#allocation5 + $0x34] sm:$0xf]
        %v367 = vld [vmem:[#allocation5 + $0x38] sm:$0xf]
        %v368 = vld [vmem:[#allocation5 + $0x3c] sm:$0xf]
        %v369 = vld [vmem:[%s2] sm:$0x1]
        %v371 = vlaneseq
        %v372 = vshrl.u32 %v371, 7
        %v373 = vsub.s32 0, %v372
        %v374 = vrot.slane %v369, %v373
        %v392 = vunpack.c.l.b16 %v353
        %v393 = vunpack.c.l.b16 %v354
        %v394 = vunpack.c.l.b16 %v355
        %v395 = vunpack.c.l.b16 %v356
        %v396 = vunpack.c.l.b16 %v357
        %v397 = vunpack.c.l.b16 %v358
        %v398 = vunpack.c.l.b16 %v359
        %v399 = vunpack.c.l.b16 %v360
        %v400 = vunpack.c.l.b16 %v361
        %v401 = vunpack.c.l.b16 %v362
        %v402 = vunpack.c.l.b16 %v363
        %v403 = vunpack.c.l.b16 %v364
        %v404 = vunpack.c.l.b16 %v365
        %v405 = vunpack.c.l.b16 %v366
        %v406 = vunpack.c.l.b16 %v367
        %v407 = vunpack.c.l.b16 %v368
        %v408 = vpack.c.b16 %v393, %v392
        %v409 = vpack.c.b16 %v395, %v394
        %v410 = vpack.c.b16 %v397, %v396
        %v411 = vpack.c.b16 %v399, %v398
        %v412 = vpack.c.b16 %v401, %v400
        %v413 = vpack.c.b16 %v403, %v402
        %v414 = vpack.c.b16 %v405, %v404
        %v415 = vpack.c.b16 %v407, %v406
        %424 = vmatprep.subr.bf16.mxu0 0
        %425 = vmatpush1.bf16.msra.mxu0 %v415
        %426 = vmatprep.subr.bf16.mxu0 0
        %427 = vmatpush1.bf16.msra.mxu0 %v414
        %428 = vmatprep.subr.bf16.mxu0 0
        %429 = vmatpush1.bf16.msra.mxu0 %v413
        %430 = vmatprep.subr.bf16.mxu0 0
        %431 = vmatpush1.bf16.msra.mxu0 %v412
        %432 = vmatprep.subr.bf16.mxu0 0
        %433 = vmatpush1.bf16.msra.mxu0 %v411
        %434 = vmatprep.subr.bf16.mxu0 0
        %435 = vmatpush1.bf16.msra.mxu0 %v410
        %436 = vmatprep.subr.bf16.mxu0 0
        %437 = vmatpush1.bf16.msra.mxu0 %v409
        %438 = vmatprep.subr.bf16.mxu0 0
        %439 = vmatpush1.bf16.msra.mxu0 %v408
        %440 = vmatprep.subr.bf16.mxu0 0
        %441 = vmatpush2.bf16.msra.mxu0 0
        %442 = vmatprep.subr.bf16.mxu0 0
        %443 = vmatpush2.bf16.msra.mxu0 0
        %444 = vmatprep.subr.bf16.mxu0 0
        %445 = vmatpush2.bf16.msra.mxu0 0
        %446 = vmatprep.subr.bf16.mxu0 0
        %447 = vmatpush2.bf16.msra.mxu0 0
        %448 = vmatprep.subr.bf16.mxu0 0
        %449 = vmatpush2.bf16.msra.mxu0 0
        %450 = vmatprep.subr.bf16.mxu0 0
        %451 = vmatpush2.bf16.msra.mxu0 0
        %452 = vmatprep.subr.bf16.mxu0 0
        %453 = vmatpush2.bf16.msra.mxu0 0
        %454 = vmatprep.subr.bf16.mxu0 0
        %455 = vmatpush2.bf16.msra.mxu0 0
        %456 = vmatprep.mubr.bf16.mxu0 0
        %457 = vmatmul.mubr.bf16.gmra.mxu0 %v345
        %v458 = vpop.f32.mrf.mxu0
        %v459 = vadd.f32 %v374, %v458
        %v460 = vpop.f32.mrf.mxu0
        %v461 = vpop.f32.mrf.mxu0
        %v462 = vadd.f32 %v374, %v461
        %v463 = vpop.f32.mrf.mxu0
        %464 = vmatprep.mubr.bf16.mxu0 0
        %465 = vmatmul.mubr.bf16.gmra.mxu0 %v346
        %v466 = vpop.f32.mrf.mxu0
        %v467 = vadd.f32 %v374, %v466
        %v468 = vpop.f32.mrf.mxu0
        %v469 = vpop.f32.mrf.mxu0
        %v470 = vadd.f32 %v374, %v469
        %v471 = vpop.f32.mrf.mxu0
        %472 = vmatprep.mubr.bf16.mxu0 0
        %473 = vmatmul.mubr.bf16.gmra.mxu0 %v347
        %v474 = vpop.f32.mrf.mxu0
        %v475 = vadd.f32 %v374, %v474
        %v476 = vpop.f32.mrf.mxu0
        %v477 = vpop.f32.mrf.mxu0
        %v478 = vadd.f32 %v374, %v477
        %v479 = vpop.f32.mrf.mxu0
        %480 = vmatprep.mubr.bf16.mxu0 0
        %481 = vmatmul.mubr.bf16.gmra.mxu0 %v348
        %v482 = vpop.f32.mrf.mxu0
        %v483 = vadd.f32 %v374, %v482
        %v484 = vpop.f32.mrf.mxu0
        %v485 = vpop.f32.mrf.mxu0
        %v486 = vadd.f32 %v374, %v485
        %v487 = vpop.f32.mrf.mxu0
        %488 = vmatprep.mubr.bf16.mxu0 0
        %489 = vmatmul.mubr.bf16.gmra.mxu0 %v349
        %v490 = vpop.f32.mrf.mxu0
        %v491 = vadd.f32 %v374, %v490
        %v492 = vpop.f32.mrf.mxu0
        %v493 = vpop.f32.mrf.mxu0
        %v494 = vadd.f32 %v374, %v493
        %v495 = vpop.f32.mrf.mxu0
        %496 = vmatprep.mubr.bf16.mxu0 0
        %497 = vmatmul.mubr.bf16.gmra.mxu0 %v350
        %v498 = vpop.f32.mrf.mxu0
        %v499 = vadd.f32 %v374, %v498
        %v500 = vpop.f32.mrf.mxu0
        %v501 = vpop.f32.mrf.mxu0
        %v502 = vadd.f32 %v374, %v501
        %v503 = vpop.f32.mrf.mxu0
        %504 = vmatprep.mubr.bf16.mxu0 0
        %505 = vmatmul.mubr.bf16.gmra.mxu0 %v351
        %v506 = vpop.f32.mrf.mxu0
        %v507 = vadd.f32 %v374, %v506
        %v508 = vpop.f32.mrf.mxu0
        %v509 = vpop.f32.mrf.mxu0
        %v510 = vadd.f32 %v374, %v509
        %v511 = vpop.f32.mrf.mxu0
        %512 = vmatprep.mubr.bf16.mxu0 0
        %513 = vmatmul.mubr.bf16.gmra.mxu0 %v352
        %v514 = vpop.f32.mrf.mxu0
        %v515 = vadd.f32 %v374, %v514
        %v516 = vpop.f32.mrf.mxu0
        %v517 = vpop.f32.mrf.mxu0
        %v518 = vadd.f32 %v374, %v517
        %v519 = vpop.f32.mrf.mxu0
        %520 = vdwg.mxu0
        %v521 = vmax.f32 %v459, 0.0
        %v522 = vmax.f32 %v462, 0.0
        %v523 = vmax.f32 %v467, 0.0
        %v524 = vmax.f32 %v470, 0.0
        %v525 = vmax.f32 %v475, 0.0
        %v526 = vmax.f32 %v478, 0.0
        %v527 = vmax.f32 %v483, 0.0
        %v528 = vmax.f32 %v486, 0.0
        %v529 = vmax.f32 %v491, 0.0
        %v530 = vmax.f32 %v494, 0.0
        %v531 = vmax.f32 %v499, 0.0
        %v532 = vmax.f32 %v502, 0.0
        %v533 = vmax.f32 %v507, 0.0
        %v534 = vmax.f32 %v510, 0.0
        %v535 = vmax.f32 %v515, 0.0
        %v536 = vmax.f32 %v518, 0.0
        %v537 = vpack.c.bf16 %v522, %v521
        %v538 = vpack.c.bf16 %v524, %v523
        %v539 = vpack.c.bf16 %v526, %v525
        %v540 = vpack.c.bf16 %v528, %v527
        %v541 = vpack.c.bf16 %v530, %v529
        %v542 = vpack.c.bf16 %v532, %v531
        %v543 = vpack.c.bf16 %v534, %v533
        %v544 = vpack.c.bf16 %v536, %v535
        %v545 = vld [vmem:[#allocation7] sm:$0xf]
        %v546 = vld [vmem:[#allocation7 + $0x4] sm:$0xf]
        %v547 = vld [vmem:[#allocation7 + $0x8] sm:$0xf]
        %v548 = vld [vmem:[#allocation7 + $0xc] sm:$0xf]
        %v549 = vld [vmem:[#allocation7 + $0x10] sm:$0xf]
        %v550 = vld [vmem:[#allocation7 + $0x14] sm:$0xf]
        %v551 = vld [vmem:[#allocation7 + $0x18] sm:$0xf]
        %v552 = vld [vmem:[#allocation7 + $0x1c] sm:$0xf]
        %v553 = vld [vmem:[#allocation7 + $0x20] sm:$0xf]
        %v554 = vld [vmem:[#allocation7 + $0x24] sm:$0xf]
        %v555 = vld [vmem:[#allocation7 + $0x28] sm:$0xf]
        %v556 = vld [vmem:[#allocation7 + $0x2c] sm:$0xf]
        %v557 = vld [vmem:[#allocation7 + $0x30] sm:$0xf]
        %v558 = vld [vmem:[#allocation7 + $0x34] sm:$0xf]
        %v559 = vld [vmem:[#allocation7 + $0x38] sm:$0xf]
        %v560 = vld [vmem:[#allocation7 + $0x3c] sm:$0xf]
        %v561 = vld [vmem:[%s4] sm:$0x1]
        %v563 = vlaneseq
        %v564 = vshrl.u32 %v563, 7
        %v565 = vsub.s32 0, %v564
        %v566 = vrot.slane %v561, %v565
        %v584 = vunpack.c.l.b16 %v545
        %v585 = vunpack.c.l.b16 %v546
        %v586 = vunpack.c.l.b16 %v547
        %v587 = vunpack.c.l.b16 %v548
        %v588 = vunpack.c.l.b16 %v549
        %v589 = vunpack.c.l.b16 %v550
        %v590 = vunpack.c.l.b16 %v551
        %v591 = vunpack.c.l.b16 %v552
        %v592 = vunpack.c.l.b16 %v553
        %v593 = vunpack.c.l.b16 %v554
        %v594 = vunpack.c.l.b16 %v555
        %v595 = vunpack.c.l.b16 %v556
        %v596 = vunpack.c.l.b16 %v557
        %v597 = vunpack.c.l.b16 %v558
        %v598 = vunpack.c.l.b16 %v559
        %v599 = vunpack.c.l.b16 %v560
        %v600 = vpack.c.b16 %v585, %v584
        %v601 = vpack.c.b16 %v587, %v586
        %v602 = vpack.c.b16 %v589, %v588
        %v603 = vpack.c.b16 %v591, %v590
        %v604 = vpack.c.b16 %v593, %v592
        %v605 = vpack.c.b16 %v595, %v594
        %v606 = vpack.c.b16 %v597, %v596
        %v607 = vpack.c.b16 %v599, %v598
        %616 = vmatprep.subr.bf16.mxu0 0
        %617 = vmatpush1.bf16.msra.mxu0 %v607
        %618 = vmatprep.subr.bf16.mxu0 0
        %619 = vmatpush1.bf16.msra.mxu0 %v606
        %620 = vmatprep.subr.bf16.mxu0 0
        %621 = vmatpush1.bf16.msra.mxu0 %v605
        %622 = vmatprep.subr.bf16.mxu0 0
        %623 = vmatpush1.bf16.msra.mxu0 %v604
        %624 = vmatprep.subr.bf16.mxu0 0
        %625 = vmatpush1.bf16.msra.mxu0 %v603
        %626 = vmatprep.subr.bf16.mxu0 0
        %627 = vmatpush1.bf16.msra.mxu0 %v602
        %628 = vmatprep.subr.bf16.mxu0 0
        %629 = vmatpush1.bf16.msra.mxu0 %v601
        %630 = vmatprep.subr.bf16.mxu0 0
        %631 = vmatpush1.bf16.msra.mxu0 %v600
        %632 = vmatprep.subr.bf16.mxu0 0
        %633 = vmatpush2.bf16.msra.mxu0 0
        %634 = vmatprep.subr.bf16.mxu0 0
        %635 = vmatpush2.bf16.msra.mxu0 0
        %636 = vmatprep.subr.bf16.mxu0 0
        %637 = vmatpush2.bf16.msra.mxu0 0
        %638 = vmatprep.subr.bf16.mxu0 0
        %639 = vmatpush2.bf16.msra.mxu0 0
        %640 = vmatprep.subr.bf16.mxu0 0
        %641 = vmatpush2.bf16.msra.mxu0 0
        %642 = vmatprep.subr.bf16.mxu0 0
        %643 = vmatpush2.bf16.msra.mxu0 0
        %644 = vmatprep.subr.bf16.mxu0 0
        %645 = vmatpush2.bf16.msra.mxu0 0
        %646 = vmatprep.subr.bf16.mxu0 0
        %647 = vmatpush2.bf16.msra.mxu0 0
        %648 = vmatprep.mubr.bf16.mxu0 0
        %649 = vmatmul.mubr.bf16.gmra.mxu0 %v537
        %v650 = vpop.f32.mrf.mxu0
        %v651 = vadd.f32 %v566, %v650
        %v652 = vpop.f32.mrf.mxu0
        %v653 = vpop.f32.mrf.mxu0
        %v654 = vadd.f32 %v566, %v653
        %v655 = vpop.f32.mrf.mxu0
        %656 = vmatprep.mubr.bf16.mxu0 0
        %657 = vmatmul.mubr.bf16.gmra.mxu0 %v538
        %v658 = vpop.f32.mrf.mxu0
        %v659 = vadd.f32 %v566, %v658
        %v660 = vpop.f32.mrf.mxu0
        %v661 = vpop.f32.mrf.mxu0
        %v662 = vadd.f32 %v566, %v661
        %v663 = vpop.f32.mrf.mxu0
        %664 = vmatprep.mubr.bf16.mxu0 0
        %665 = vmatmul.mubr.bf16.gmra.mxu0 %v539
        %v666 = vpop.f32.mrf.mxu0
        %v667 = vadd.f32 %v566, %v666
        %v668 = vpop.f32.mrf.mxu0
        %v669 = vpop.f32.mrf.mxu0
        %v670 = vadd.f32 %v566, %v669
        %v671 = vpop.f32.mrf.mxu0
        %672 = vmatprep.mubr.bf16.mxu0 0
        %673 = vmatmul.mubr.bf16.gmra.mxu0 %v540
        %v674 = vpop.f32.mrf.mxu0
        %v675 = vadd.f32 %v566, %v674
        %v676 = vpop.f32.mrf.mxu0
        %v677 = vpop.f32.mrf.mxu0
        %v678 = vadd.f32 %v566, %v677
        %v679 = vpop.f32.mrf.mxu0
        %680 = vmatprep.mubr.bf16.mxu0 0
        %681 = vmatmul.mubr.bf16.gmra.mxu0 %v541
        %v682 = vpop.f32.mrf.mxu0
        %v683 = vadd.f32 %v566, %v682
        %v684 = vpop.f32.mrf.mxu0
        %v685 = vpop.f32.mrf.mxu0
        %v686 = vadd.f32 %v566, %v685
        %v687 = vpop.f32.mrf.mxu0
        %688 = vmatprep.mubr.bf16.mxu0 0
        %689 = vmatmul.mubr.bf16.gmra.mxu0 %v542
        %v690 = vpop.f32.mrf.mxu0
        %v691 = vadd.f32 %v566, %v690
        %v692 = vpop.f32.mrf.mxu0
        %v693 = vpop.f32.mrf.mxu0
        %v694 = vadd.f32 %v566, %v693
        %v695 = vpop.f32.mrf.mxu0
        %696 = vmatprep.mubr.bf16.mxu0 0
        %697 = vmatmul.mubr.bf16.gmra.mxu0 %v543
        %v698 = vpop.f32.mrf.mxu0
        %v699 = vadd.f32 %v566, %v698
        %v700 = vpop.f32.mrf.mxu0
        %v701 = vpop.f32.mrf.mxu0
        %v702 = vadd.f32 %v566, %v701
        %v703 = vpop.f32.mrf.mxu0
        %704 = vmatprep.mubr.bf16.mxu0 0
        %705 = vmatmul.mubr.bf16.gmra.mxu0 %v544
        %v706 = vpop.f32.mrf.mxu0
        %v707 = vadd.f32 %v566, %v706
        %v708 = vpop.f32.mrf.mxu0
        %v709 = vpop.f32.mrf.mxu0
        %v710 = vadd.f32 %v566, %v709
        %v711 = vpop.f32.mrf.mxu0
        %712 = vdwg.mxu0
        %713 = vadd.xlane.f32.xlu0 %v651
        %v714 = vpop.xlane.xlu0 %713
        %715 = vadd.xlane.f32.xlu0 %v654
        %v716 = vpop.xlane.xlu0 %715
        %717 = vadd.xlane.f32.xlu0 %v659
        %v718 = vpop.xlane.xlu0 %717
        %719 = vadd.xlane.f32.xlu0 %v662
        %v720 = vpop.xlane.xlu0 %719
        %721 = vadd.xlane.f32.xlu0 %v667
        %v722 = vpop.xlane.xlu0 %721
        %723 = vadd.xlane.f32.xlu0 %v670
        %v724 = vpop.xlane.xlu0 %723
        %725 = vadd.xlane.f32.xlu0 %v675
        %v726 = vpop.xlane.xlu0 %725
        %727 = vadd.xlane.f32.xlu0 %v678
        %v728 = vpop.xlane.xlu0 %727
        %729 = vadd.xlane.f32.xlu0 %v683
        %v730 = vpop.xlane.xlu0 %729
        %731 = vadd.xlane.f32.xlu0 %v686
        %v732 = vpop.xlane.xlu0 %731
        %733 = vadd.xlane.f32.xlu0 %v691
        %v734 = vpop.xlane.xlu0 %733
        %735 = vadd.xlane.f32.xlu0 %v694
        %v736 = vpop.xlane.xlu0 %735
        %737 = vadd.xlane.f32.xlu0 %v699
        %v738 = vpop.xlane.xlu0 %737
        %739 = vadd.xlane.f32.xlu0 %v702
        %v740 = vpop.xlane.xlu0 %739
        %741 = vadd.xlane.f32.xlu0 %v707
        %v742 = vpop.xlane.xlu0 %741
        %743 = vadd.xlane.f32.xlu0 %v710
        %v744 = vpop.xlane.xlu0 %743
        %v745 = vrcp.pop 128.0
        %v746 = vmul.f32 %v714, %v745
        %v747 = vmul.f32 %v716, %v745
        %v748 = vmul.f32 %v718, %v745
        %v749 = vmul.f32 %v720, %v745
        %v750 = vmul.f32 %v722, %v745
        %v751 = vmul.f32 %v724, %v745
        %v752 = vmul.f32 %v726, %v745
        %v753 = vmul.f32 %v728, %v745
        %v754 = vmul.f32 %v730, %v745
        %v755 = vmul.f32 %v732, %v745
        %v756 = vmul.f32 %v734, %v745
        %v757 = vmul.f32 %v736, %v745
        %v758 = vmul.f32 %v738, %v745
        %v759 = vmul.f32 %v740, %v745
        %v760 = vmul.f32 %v742, %v745
        %v761 = vmul.f32 %v744, %v745
        %v762 = vsub.f32 %v651, %v746
        %v763 = vsub.f32 %v654, %v747
        %v764 = vsub.f32 %v659, %v748
        %v765 = vsub.f32 %v662, %v749
        %v766 = vsub.f32 %v667, %v750
        %v767 = vsub.f32 %v670, %v751
        %v768 = vsub.f32 %v675, %v752
        %v769 = vsub.f32 %v678, %v753
        %v770 = vsub.f32 %v683, %v754
        %v771 = vsub.f32 %v686, %v755
        %v772 = vsub.f32 %v691, %v756
        %v773 = vsub.f32 %v694, %v757
        %v774 = vsub.f32 %v699, %v758
        %v775 = vsub.f32 %v702, %v759
        %v776 = vsub.f32 %v707, %v760
        %v777 = vsub.f32 %v710, %v761
        %v778 = vmul.f32 %v762, %v762
        %v779 = vmul.f32 %v763, %v763
        %v780 = vmul.f32 %v764, %v764
        %v781 = vmul.f32 %v765, %v765
        %v782 = vmul.f32 %v766, %v766
        %v783 = vmul.f32 %v767, %v767
        %v784 = vmul.f32 %v768, %v768
        %v785 = vmul.f32 %v769, %v769
        %v786 = vmul.f32 %v770, %v770
        %v787 = vmul.f32 %v771, %v771
        %v788 = vmul.f32 %v772, %v772
        %v789 = vmul.f32 %v773, %v773
        %v790 = vmul.f32 %v774, %v774
        %v791 = vmul.f32 %v775, %v775
        %v792 = vmul.f32 %v776, %v776
        %v793 = vmul.f32 %v777, %v777
        %794 = vadd.xlane.f32.xlu0 %v778
        %v795 = vpop.xlane.xlu0 %794
        %796 = vadd.xlane.f32.xlu0 %v779
        %v797 = vpop.xlane.xlu0 %796
        %798 = vadd.xlane.f32.xlu0 %v780
        %v799 = vpop.xlane.xlu0 %798
        %800 = vadd.xlane.f32.xlu0 %v781
        %v801 = vpop.xlane.xlu0 %800
        %802 = vadd.xlane.f32.xlu0 %v782
        %v803 = vpop.xlane.xlu0 %802
        %804 = vadd.xlane.f32.xlu0 %v783
        %v805 = vpop.xlane.xlu0 %804
        %806 = vadd.xlane.f32.xlu0 %v784
        %v807 = vpop.xlane.xlu0 %806
        %808 = vadd.xlane.f32.xlu0 %v785
        %v809 = vpop.xlane.xlu0 %808
        %810 = vadd.xlane.f32.xlu0 %v786
        %v811 = vpop.xlane.xlu0 %810
        %812 = vadd.xlane.f32.xlu0 %v787
        %v813 = vpop.xlane.xlu0 %812
        %814 = vadd.xlane.f32.xlu0 %v788
        %v815 = vpop.xlane.xlu0 %814
        %816 = vadd.xlane.f32.xlu0 %v789
        %v817 = vpop.xlane.xlu0 %816
        %818 = vadd.xlane.f32.xlu0 %v790
        %v819 = vpop.xlane.xlu0 %818
        %820 = vadd.xlane.f32.xlu0 %v791
        %v821 = vpop.xlane.xlu0 %820
        %822 = vadd.xlane.f32.xlu0 %v792
        %v823 = vpop.xlane.xlu0 %822
        %824 = vadd.xlane.f32.xlu0 %v793
        %v825 = vpop.xlane.xlu0 %824
        %v826 = vmul.f32 %v795, %v745
        %v827 = vmul.f32 %v797, %v745
        %v828 = vmul.f32 %v799, %v745
        %v829 = vmul.f32 %v801, %v745
        %v830 = vmul.f32 %v803, %v745
        %v831 = vmul.f32 %v805, %v745
        %v832 = vmul.f32 %v807, %v745
        %v833 = vmul.f32 %v809, %v745
        %v834 = vmul.f32 %v811, %v745
        %v835 = vmul.f32 %v813, %v745
        %v836 = vmul.f32 %v815, %v745
        %v837 = vmul.f32 %v817, %v745
        %v838 = vmul.f32 %v819, %v745
        %v839 = vmul.f32 %v821, %v745
        %v840 = vmul.f32 %v823, %v745
        %v841 = vmul.f32 %v825, %v745
        %v842 = vadd.f32 %v826, 1e-05
        %v843 = vadd.f32 %v827, 1e-05
        %v844 = vadd.f32 %v828, 1e-05
        %v845 = vadd.f32 %v829, 1e-05
        %v846 = vadd.f32 %v830, 1e-05
        %v847 = vadd.f32 %v831, 1e-05
        %v848 = vadd.f32 %v832, 1e-05
        %v849 = vadd.f32 %v833, 1e-05
        %v850 = vadd.f32 %v834, 1e-05
        %v851 = vadd.f32 %v835, 1e-05
        %v852 = vadd.f32 %v836, 1e-05
        %v853 = vadd.f32 %v837, 1e-05
        %v854 = vadd.f32 %v838, 1e-05
        %v855 = vadd.f32 %v839, 1e-05
        %v856 = vadd.f32 %v840, 1e-05
        %v857 = vadd.f32 %v841, 1e-05
        %v858 = vrsqrt.pop %v842
        %v859 = vrsqrt.pop %v843
        %v860 = vrsqrt.pop %v844
        %v861 = vrsqrt.pop %v845
        %v862 = vrsqrt.pop %v846
        %v863 = vrsqrt.pop %v847
        %v864 = vrsqrt.pop %v848
        %v865 = vrsqrt.pop %v849
        %v866 = vrsqrt.pop %v850
        %v867 = vrsqrt.pop %v851
        %v868 = vrsqrt.pop %v852
        %v869 = vrsqrt.pop %v853
        %v870 = vrsqrt.pop %v854
        %v871 = vrsqrt.pop %v855
        %v872 = vrsqrt.pop %v856
        %v873 = vrsqrt.pop %v857
        %v874 = vmul.f32 %v762, %v858
        %v875 = vmul.f32 %v763, %v859
        %v876 = vmul.f32 %v764, %v860
        %v877 = vmul.f32 %v765, %v861
        %v878 = vmul.f32 %v766, %v862
        %v879 = vmul.f32 %v767, %v863
        %v880 = vmul.f32 %v768, %v864
        %v881 = vmul.f32 %v769, %v865
        %v882 = vmul.f32 %v770, %v866
        %v883 = vmul.f32 %v771, %v867
        %v884 = vmul.f32 %v772, %v868
        %v885 = vmul.f32 %v773, %v869
        %v886 = vmul.f32 %v774, %v870
        %v887 = vmul.f32 %v775, %v871
        %v888 = vmul.f32 %v776, %v872
        %v889 = vmul.f32 %v777, %v873
        %v890 = vld [vmem:[%s5] sm:$0x1]
        %v892 = vlaneseq
        %v893 = vshrl.u32 %v892, 7
        %v894 = vsub.s32 0, %v893
        %v895 = vrot.slane %v890, %v894
        %v897 = vmul.f32 %v874, %v895
        %v898 = vmul.f32 %v875, %v895
        %v899 = vmul.f32 %v876, %v895
        %v900 = vmul.f32 %v877, %v895
        %v901 = vmul.f32 %v878, %v895
        %v902 = vmul.f32 %v879, %v895
        %v903 = vmul.f32 %v880, %v895
        %v904 = vmul.f32 %v881, %v895
        %v905 = vmul.f32 %v882, %v895
        %v906 = vmul.f32 %v883, %v895
        %v907 = vmul.f32 %v884, %v895
        %v908 = vmul.f32 %v885, %v895
        %v909 = vmul.f32 %v886, %v895
        %v910 = vmul.f32 %v887, %v895
        %v911 = vmul.f32 %v888, %v895
        %v912 = vmul.f32 %v889, %v895
        %v913 = vld [vmem:[%s6] sm:$0x1]
        %v915 = vlaneseq
        %v916 = vshrl.u32 %v915, 7
        %v917 = vsub.s32 0, %v916
        %v918 = vrot.slane %v913, %v917
        %v920 = vadd.f32 %v897, %v918
        %v921 = vadd.f32 %v898, %v918
        %v922 = vadd.f32 %v899, %v918
        %v923 = vadd.f32 %v900, %v918
        %v924 = vadd.f32 %v901, %v918
        %v925 = vadd.f32 %v902, %v918
        %v926 = vadd.f32 %v903, %v918
        %v927 = vadd.f32 %v904, %v918
        %v928 = vadd.f32 %v905, %v918
        %v929 = vadd.f32 %v906, %v918
        %v930 = vadd.f32 %v907, %v918
        %v931 = vadd.f32 %v908, %v918
        %v932 = vadd.f32 %v909, %v918
        %v933 = vadd.f32 %v910, %v918
        %v934 = vadd.f32 %v911, %v918
        %v935 = vadd.f32 %v912, %v918
        %936 = vst [vmem:[%s325] sm:$0xff] %v920
        %937 = vst [vmem:[%s325 + $0x8] sm:$0xff] %v921
        %938 = vst [vmem:[%s325 + $0x10] sm:$0xff] %v922
        %939 = vst [vmem:[%s325 + $0x18] sm:$0xff] %v923
        %940 = vst [vmem:[%s325 + $0x20] sm:$0xff] %v924
        %941 = vst [vmem:[%s325 + $0x28] sm:$0xff] %v925
        %942 = vst [vmem:[%s325 + $0x30] sm:$0xff] %v926
        %943 = vst [vmem:[%s325 + $0x38] sm:$0xff] %v927
        %944 = vst [vmem:[%s325 + $0x40] sm:$0xff] %v928
        %945 = vst [vmem:[%s325 + $0x48] sm:$0xff] %v929
        %946 = vst [vmem:[%s325 + $0x50] sm:$0xff] %v930
        %947 = vst [vmem:[%s325 + $0x58] sm:$0xff] %v931
        %948 = vst [vmem:[%s325 + $0x60] sm:$0xff] %v932
        %949 = vst [vmem:[%s325 + $0x68] sm:$0xff] %v933
        %950 = vst [vmem:[%s325 + $0x70] sm:$0xff] %v934
        %951 = vst [vmem:[%s325 + $0x78] sm:$0xff] %v935
        %s952 = sand.u32 %s185, 1
        %s953 = scalar_lea.sflag [#allocation4], %s952
        %s954 = sand.u32 %s185, 1
        %s955 = smul.addr %s954, 128
        %s956 = scalar_lea.vmem [#allocation8], %s955
        // Predicated region
        $region61: #{mlp_layer.1} parent=47 // pred_check
          %p957 = pneg %p195
        $region62: #{mlp_layer.1} parent=47 // pred_check_branch
          %959 = sbr.rel (%p957) target = $region64
        $region63: #{mlp_layer.1} parent=47 // pred_region
          %s960 = smul.u32 16, %s25
          %s962 = ssub.s32 2048, 2048
          %963 = vsyncadd %s953, %s962
          %s964 = smul.addr %s960, 128
          %s965 = scalar_lea.hbm %s7, %s964
          %s966 = sshll.u32 %s956, 4
          %s967 = int_to_ptr.vmem [resolvable:$true] %s966
          %972 = dma.vmem_to_hbm [thread:$0]  %s967, 2048, %s965, %s953, 128, 128, 8
        $region64: #{mlp_layer.1} parent=47 // pred_fallthru
          _
      $region48: #{mlp_layer.1} parent=5 // pred_fallthru
        _
      %p973 = scmp.le.s32.totalorder 2, %s20
      // Predicated region
      $region65: #{mlp_layer.1} parent=5 // pred_check
        %p974 = pneg %p973
      $region66: #{mlp_layer.1} parent=5 // pred_check_branch
        %976 = sbr.rel (%p974) target = $region68
      $region67: #{mlp_layer.1} parent=5 // pred_region
        %s977 = ssub.s32 %s20, 2
        // Predicated region
        $region69: #{mlp_layer.1} parent=67 // pred_check
          %p978 = pneg %p201
        $region70: #{mlp_layer.1} parent=67 // pred_check_branch
          %980 = sbr.rel (%p978) target = $region72
        $region71: #{mlp_layer.1} parent=67 // pred_region
          %s981 = sand.u32 %s186, 1
          %s982 = scalar_lea.sflag [#allocation4], %s981
          %s983 = sand.u32 %s186, 1
          %s984 = smul.addr %s983, 128
          %s985 = scalar_lea.vmem [#allocation8], %s984
          %986 = dma.done %s982, 2048
        $region72: #{mlp_layer.1} parent=67 // pred_fallthru
          _
      $region68: #{mlp_layer.1} parent=5 // pred_fallthru
        _
    $region6: #{mlp_layer.1} parent=1 // loop_footer
      %s24 = sadd.s32 1, %s20
    $region7: #{mlp_layer.1} parent=1 // loop_footer_branch
      %19 = sbr.rel target = $region3
    $region8: #{mlp_layer.1} parent=1 // loop_exit
      _
    %987 = vsyncpa [#allocation3], 1
    %s988 = scalar_lea.sflag [#allocation3], 1
    %989 = vsyncpa %s988, 1
    %990 = vsyncpa [#allocation6], 1
    %991 = vsyncpa [#allocation4], 1
    %s992 = scalar_lea.sflag [#allocation4], 1
    %993 = vsyncpa %s992, 1

</llo_original>
